<compile_context>
chip_gen: v7x
topology: tpu7x:2x2x1
jax: 0.10.0
libtpu: 0.0.40
codegen_flags: <defaults>
</compile_context>

<pallas_src>
import functools

import jax
import jax.numpy as jnp
from jax.experimental import pallas as pl
from jax.experimental.pallas import tpu as pltpu


def _round_up(x, m):
    return ((x + m - 1) // m) * m


# ----------------------------------------------------------------------------
# Kernel: per-part column sums of x (sum over rows), masked for ragged tiles.
# ----------------------------------------------------------------------------
def _masked_colsum_kernel(x_ref, out_ref, *, tm, n_rows, tiles_per_part,
                          need_mask):
    p = pl.program_id(0)   # parallel part (TensorCore on v7x)
    k = pl.program_id(1)   # reduction step over this part's row tiles

    @pl.when(k == 0)
    def _():
        out_ref[...] = jnp.zeros_like(out_ref)

    x = x_ref[...].astype(jnp.float32)
    if need_mask:
        # Intended (unclamped) tile index; rows past n_rows contribute 0,
        # which also neutralizes the clamped re-read of the last tile.
        tile = p * tiles_per_part + k
        rows = tile * tm + jax.lax.broadcasted_iota(jnp.int32, x_ref.shape, 0)
        x = jnp.where(rows < n_rows, x, 0.0)

    # Cross-sublane reduce of this tile; accumulate into the resident
    # (1, 1, H) output block (constant across the "arbitrary" axis).
    out_ref[...] += jnp.sum(x, axis=0, keepdims=True)[None]


def column_sums(x2d, *, max_block_bytes=4 * 1024 * 1024, max_parts=2):
    """Per-part column sums of x2d. Returns (num_parts, 1, H) float32."""
    M, H = x2d.shape
    itemsize = jnp.dtype(x2d.dtype).itemsize

    # Largest row tile (multiple of 8) whose double-buffered stream stays
    # within ~8 MiB of VMEM -> safe on v5e/v6e/v7x default scoped budgets.
    tm = max(8, (max_block_bytes // (H * itemsize)) // 8 * 8)
    tm = int(min(tm, _round_up(M, 8)))

    ntiles = -(-M // tm)
    num_parts = max(1, min(max_parts, ntiles))      # 2 TCs on v7x, 1 elsewhere
    tiles_per_part = -(-ntiles // num_parts)
    need_mask = (M % tm != 0) or (num_parts * tiles_per_part != ntiles)

    kernel = functools.partial(
        _masked_colsum_kernel,
        tm=tm, n_rows=M, tiles_per_part=tiles_per_part, need_mask=need_mask)

    def x_index(p, k):
        # Clamp so the DMA never addresses past the last valid tile; overshoot
        # rows are zeroed by the in-kernel mask.
        return (jnp.minimum(p * tiles_per_part + k, ntiles - 1), 0)

    return pl.pallas_call(
        kernel,
        out_shape=jax.ShapeDtypeStruct((num_parts, 1, H), jnp.float32),
        grid=(num_parts, tiles_per_part),
        in_specs=[pl.BlockSpec((tm, H), x_index)],
        out_specs=pl.BlockSpec((1, 1, H), lambda p, k: (p, 0, 0)),
        compiler_params=pltpu.CompilerParams(
            dimension_semantics=("parallel", "arbitrary"),
            vmem_limit_bytes=32 * 1024 * 1024),
    )(x2d)


# ----------------------------------------------------------------------------
# Wrapper.forward equivalent.
# ----------------------------------------------------------------------------
@functools.partial(jax.jit, static_argnames=("loss_index",))
def wrapper_forward(x, params, loss_index):
    w0, b0, w1, b1 = params
    # loss_index is static -> select the head in Python; the unused head is
    # dead code for this forward (Wrapper only returns the scalar loss).
    w_sel, b_sel = ((w0, b0), (w1, b1))[loss_index]

    B, S, H = x.shape
    M = B * S
    x2d = x.reshape(M, H)                 # glue reshape in plain JAX

    parts = column_sums(x2d)              # (P, 1, H) f32 partial column sums
    colsum = jnp.sum(parts, axis=(0, 1))  # (H,)

    # sum(x @ W + b) == colsum(x) . rowsum(W) + M * sum(b)   (exact algebra).
    # All remaining math touches only H*D + D elements -> negligible.
    w_rowsum = jnp.sum(w_sel.astype(jnp.float32), axis=1)   # (H,)
    # Note: float32(M) is exact for M < 2^24; pass M as int if it can exceed.
    loss = jnp.dot(colsum, w_rowsum) + jnp.float32(M) * jnp.sum(
        b_sel.astype(jnp.float32))
    # poptorch.identity_loss(scalar, reduction='mean') == scalar (mean of 0-d).
    return loss


if __name__ == "__main__":
    # Lane-dense toy shapes: feature dims are multiples of 128.
    B, S, H, D = 2, 8, 128, 128
    key = jax.random.PRNGKey(0)
    kx, k0, k1 = jax.random.split(key, 3)

    x = jax.random.normal(kx, (B, S, H), dtype=jnp.float32)
    # Deterministic synthetic parameters for the two linear heads.
    w0 = 0.1 * jax.random.normal(k0, (H, D), dtype=jnp.float32)
    b0 = 0.01 * jnp.arange(D, dtype=jnp.float32).reshape(1, D)
    w1 = 0.1 * jax.random.normal(k1, (H, D), dtype=jnp.float32)
    b1 = -0.01 * jnp.arange(D, dtype=jnp.float32).reshape(1, D)

    loss_index = 1
    loss = wrapper_forward(x, (w0, b0, w1, b1), loss_index)
    loss = jax.block_until_ready(loss)

    # Reference check in plain JAX (full two-head model, then select + sum).
    x2d = x.reshape(B * S, H)
    ref_outputs = (x2d @ w0 + b0, x2d @ w1 + b1)
    ref = jnp.sum(ref_outputs[loss_index])
    assert jnp.allclose(loss, ref, rtol=1e-4, atol=1e-3), (loss, ref)

    print("KERNEL_OK")
</pallas_src>

<mosaic_0001>
module attributes {stable_mosaic.version = 11 : i64} {
  func.func @_masked_colsum_kernel(%arg0: i32, %arg1: i32, %arg2: memref<16x128xf32, #tpu.memory_space<vmem>>, %arg3: memref<1x1x128xf32, #tpu.memory_space<vmem>>) attributes {dimension_semantics = [#tpu.dimension_semantics<parallel>, #tpu.dimension_semantics<arbitrary>], iteration_bounds = array<i64: 1, 1>, scalar_prefetch = 0 : i64, scratch_operands = 0 : i64, tpu.core_type = #tpu.core_type<tc>, window_params = [{transform_indices = @transform_0, window_bounds = array<i64: 16, 128>}, {transform_indices = @transform_1, window_bounds = array<i64: 1, 1, 128>}]} {
    %c0_i32 = arith.constant 0 : i32
    %0 = arith.cmpi eq, %arg1, %c0_i32 : i32
    %1 = arith.extui %0 : i1 to i32
    %c0_i32_0 = arith.constant 0 : i32
    %2 = arith.cmpi ne, %1, %c0_i32_0 : i32
    scf.if %2 {
      %cst_8 = arith.constant 0.000000e+00 : f32
      %10 = vector.broadcast %cst_8 : f32 to vector<1x1x128xf32>
      %c0_9 = arith.constant 0 : index
      %c0_10 = arith.constant 0 : index
      %c0_11 = arith.constant 0 : index
      %11 = vector.load %arg3[%c0_9, %c0_10, %c0_11] : memref<1x1x128xf32, #tpu.memory_space<vmem>>, vector<1x1x128xf32>
      tpu.vector_store %arg3[%c0_9, %c0_10, %c0_11], %10 {strides = array<i32>} : memref<1x1x128xf32, #tpu.memory_space<vmem>>, vector<1x1x128xf32>,
    } else {
    }
    %c0 = arith.constant 0 : index
    %c0_1 = arith.constant 0 : index
    %3 = vector.load %arg2[%c0, %c0_1] : memref<16x128xf32, #tpu.memory_space<vmem>>, vector<16x128xf32>
    %c0_2 = arith.constant 0 : index
    %c0_3 = arith.constant 0 : index
    %c0_4 = arith.constant 0 : index
    %4 = vector.load %arg3[%c0_2, %c0_3, %c0_4] : memref<1x1x128xf32, #tpu.memory_space<vmem>>, vector<1x1x128xf32>
    %cst = arith.constant dense<0.000000e+00> : vector<128xf32>
    %5 = vector.multi_reduction <add>, %3, %cst [0] : vector<16x128xf32> to vector<128xf32>
    %6 = vector.shape_cast %5 : vector<128xf32> to vector<1x128xf32>
    %7 = vector.shape_cast %6 : vector<1x128xf32> to vector<1x1x128xf32>
    %8 = arith.addf %4, %7 : vector<1x1x128xf32>
    %c0_5 = arith.constant 0 : index
    %c0_6 = arith.constant 0 : index
    %c0_7 = arith.constant 0 : index
    %9 = vector.load %arg3[%c0_5, %c0_6, %c0_7] : memref<1x1x128xf32, #tpu.memory_space<vmem>>, vector<1x1x128xf32>
    tpu.vector_store %arg3[%c0_5, %c0_6, %c0_7], %8 {strides = array<i32>} : memref<1x1x128xf32, #tpu.memory_space<vmem>>, vector<1x1x128xf32>,
    return
  }
  func.func @transform_0(%arg0: i32, %arg1: i32) -> (i32, i32) {
    %c1_i32 = arith.constant 1 : i32
    %0 = arith.muli %arg0, %c1_i32 : i32
    %1 = arith.addi %0, %arg1 : i32
    %c0_i32 = arith.constant 0 : i32
    %2 = arith.minsi %1, %c0_i32 : i32
    %c0_i32_0 = arith.constant 0 : i32
    %c0_i32_1 = arith.constant 0 : i32
    return %2, %c0_i32_0 : i32, i32
  }
  func.func @transform_1(%arg0: i32, %arg1: i32) -> (i32, i32, i32) {
    %c0_i32 = arith.constant 0 : i32
    %c0_i32_0 = arith.constant 0 : i32
    %c0_i32_1 = arith.constant 0 : i32
    return %arg0, %c0_i32, %c0_i32_0 : i32, i32, i32
  }
}

</mosaic_0001>

<llo_original>
// kernel: wrapper_forward.1
$region0: #{wrapper_forward.1}
  #allocation0 [shape = 'u32[]', space=smem, size = 0x4, offset = 0x4, fixed_abs, tag = 'smem constant byte address 0x4 - core index']
  #allocation1 [shape = 'u32[144,128]{1,0:T(1,128)}', space=vmem, size = 0x12000, scoped, tag = 'internal scratch']
  %s0 = inlined_call_operand.vmem [shape: f32[16,128], index: 0, kind: input, shape index: {}]
  %s1 = inlined_call_operand.vmem [shape: f32[1,1,128], index: 1, kind: output, shape index: {}]
  %s2 = sld [smem:[#allocation0]]
  $region18: #{wrapper_forward.1} parent=0
    _
  %s4 = ssub.s32 1, %s2
  %s5 = scalar_select 0, %s4, %s2
  // Predicated region
  $region2: #{wrapper_forward.1} parent=0 // pred_check
    _
  $region3: #{wrapper_forward.1} parent=0 // pred_check_branch
    %7 = sbr.rel (0) target = $region5
  $region4: #{wrapper_forward.1} parent=0 // pred_region
    %s8 = sadd.s32 0, 0
    %p9 = scmp.lt.s32.totalorder %s8, 0
    %s10 = scalar_select %p9, %s8, 0
    %s11 = smul.u32 2, %s10
    %p12 = scmp.lt.s32.totalorder %s11, 1
    %s13 = scalar_select %p12, %s11, 1
    %s14 = smul.addr %s13, 8
    %s15 = scalar_lea.vmem %s0, %s14
    %s16 = sadd.s32 0, 0
    %p17 = scmp.lt.s32.totalorder %s16, 0
    %s18 = scalar_select %p17, %s16, 0
    %s19 = smul.u32 2, %s18
  $region5: #{wrapper_forward.1} parent=0 // pred_fallthru
    _
  %s20 = sadd.s32 0, 0
  %p21 = scmp.lt.s32.totalorder %s20, 0
  %s22 = scalar_select %p21, %s20, 0
  %s23 = smul.u32 2, %s22
  %p24 = scmp.lt.s32.totalorder %s23, 1
  %s25 = scalar_select %p24, %s23, 1
  %s26 = smul.addr %s25, 8
  %s27 = scalar_lea.vmem %s0, %s26
  %s28 = sadd.s32 0, 0
  %p29 = scmp.lt.s32.totalorder %s28, 0
  %s30 = scalar_select %p29, %s28, 0
  %s31 = smul.u32 2, %s30
  %p32 = scmp.lt.s32.totalorder %s31, 1
  %s33 = scalar_select %p32, %s31, 1
  %s34 = smul.addr %s33, 8
  %s35 = scalar_lea.vmem %s0, %s34
  %s36 = sadd.s32 0, 0
  %p37 = scmp.lt.s32.totalorder %s36, 0
  %s38 = scalar_select %p37, %s36, 0
  %s39 = smul.u32 2, %s38
  %p40 = scmp.eq.s32.totalorder 0, 0
  // Predicated region
  $region6: #{wrapper_forward.1} parent=0 // pred_check
    %p41 = pneg %p40
  $region7: #{wrapper_forward.1} parent=0 // pred_check_branch
    %43 = sbr.rel (%p41) target = $region9
  $region8: #{wrapper_forward.1} parent=0 // pred_region
    %44 = vst [vmem:[%s1] sm:$0x1] 0.0
  $region9: #{wrapper_forward.1} parent=0 // pred_fallthru
    _
  %v45 = vld [vmem:[%s35] sm:$0xff]
  %v46 = vld [vmem:[%s35 + $0x8] sm:$0xff]
  %v47 = vld [vmem:[%s1] sm:$0x1]
  %v48 = vadd.f32 %v45, %v46
  %v49 = vrot.slane %v48, 4
  %v50 = vadd.f32 %v48, %v49
  %v51 = vrot.slane %v50, 2
  %v52 = vadd.f32 %v50, %v51
  %v53 = vrot.slane %v52, 1
  %v54 = vadd.f32 %v52, %v53
  %v55 = vadd.f32 %v47, %v54
  %56 = vst [vmem:[%s1] sm:$0x1] %v55
  // Predicated region
  $region10: #{wrapper_forward.1} parent=0 // pred_check
    _
  $region11: #{wrapper_forward.1} parent=0 // pred_check_branch
    %58 = sbr.rel (0) target = $region13
  $region12: #{wrapper_forward.1} parent=0 // pred_region
    _
  $region13: #{wrapper_forward.1} parent=0 // pred_fallthru
    _
  // Predicated region
  $region14: #{wrapper_forward.1} parent=0 // pred_check
    _
  $region15: #{wrapper_forward.1} parent=0 // pred_check_branch
    %60 = sbr.rel (0) target = $region17
  $region16: #{wrapper_forward.1} parent=0 // pred_region
    _
  $region17: #{wrapper_forward.1} parent=0 // pred_fallthru
    _

</llo_original>
